<compile_context>
chip_gen: v6e
topology: v6e:2x2x1
jax: 0.10.0
libtpu: 0.0.40
codegen_flags: <defaults>
</compile_context>

<pallas_src>
import functools

import jax
import jax.numpy as jnp
from jax.experimental import pallas as pl
from jax.experimental.pallas import tpu as pltpu


def _round_up(x, m):
    return (x + m - 1) // m * m


# ----------------------------------------------------------------------------
# Kernel
# ----------------------------------------------------------------------------
def _make_lstm_kernel(n_layers, T, B_TILE, H, mm_dtype):
    """Input-ref order:
        x (T, B_TILE, E),
        per layer: w_ih_f (in,4H), w_ih_b (in,4H), b_f (1,4H), b_b (1,4H),
                   w_hh_f (H,4H),  w_hh_b (H,4H),
        fc_w_f (H, O_PAD), fc_w_b (H, O_PAD), fc_b (1, O_PAD)
    Output: (B_TILE, O_PAD).
    Scratch: xpf (T,B_TILE,4H); if n_layers>1 also xpb, scr_f, scr_b.
    Gate column order inside every 4H block is [i, f, o, g].
    """
    H2, H3, H4 = 2 * H, 3 * H, 4 * H
    n_in = 1 + 6 * n_layers + 3

    def mm(a, b):
        return jnp.dot(a, b, preferred_element_type=jnp.float32)

    def cell(gates, c):
        # One sigmoid over a contiguous (B, 3H) slab, one tanh over (B, H).
        ifo = jax.nn.sigmoid(gates[:, :H3])
        g = jnp.tanh(gates[:, H3:])
        c_new = ifo[:, H:H2] * c + ifo[:, :H] * g
        h_new = ifo[:, H2:] * jnp.tanh(c_new)
        return h_new, c_new

    def kernel(*refs):
        in_refs = refs[:n_in]
        out_ref = refs[n_in]
        scratch = refs[n_in + 1:]
        if n_layers > 1:
            xpf, xpb, scr_f, scr_b = scratch
        else:
            (xpf,) = scratch
            xpb = scr_f = scr_b = None

        x_ref = in_refs[0]
        fc_wf_ref, fc_wb_ref, fc_b_ref = in_refs[n_in - 3:n_in]

        zeros = jnp.zeros((B_TILE, H), jnp.float32)
        TB = T * B_TILE
        h_f_last = h_b_last = None

        for l in range(n_layers):
            base = 1 + 6 * l
            (w_ih_f_ref, w_ih_b_ref, b_f_ref, b_b_ref,
             w_hh_f_ref, w_hh_b_ref) = in_refs[base:base + 6]
            is_last = l == n_layers - 1
            w_hh_f = w_hh_f_ref[...]
            w_hh_b = w_hh_b_ref[...]
            b_f = b_f_ref[...]
            b_b = b_b_ref[...]

            # ---- hoisted input projection -> VMEM scratch (one big MXU
            # matmul per direction; bias folded in).  The recurrence below
            # only reads per-step slices (plain vld's, no spilled mega-value).
            if l == 0:
                in_dim = x_ref.shape[-1]
                xin = x_ref[...].reshape(TB, in_dim)
                xpf[...] = (mm(xin, w_ih_f_ref[...]) + b_f).reshape(T, B_TILE, H4)
                if not is_last:
                    xpb[...] = (mm(xin, w_ih_b_ref[...]) + b_b).reshape(T, B_TILE, H4)
                else:
                    xg_b_last = mm(x_ref[T - 1], w_ih_b_ref[...]) + b_b
            else:
                hf_seq = scr_f[...].reshape(TB, H).astype(mm_dtype)
                hb_seq = scr_b[...].reshape(TB, H).astype(mm_dtype)
                w_ih_f = w_ih_f_ref[...]            # (2H, 4H)
                w_ih_b = w_ih_b_ref[...]
                xpf[...] = (mm(hf_seq, w_ih_f[:H]) + mm(hb_seq, w_ih_f[H:])
                            + b_f).reshape(T, B_TILE, H4)
                if not is_last:
                    xpb[...] = (mm(hf_seq, w_ih_b[:H]) + mm(hb_seq, w_ih_b[H:])
                                + b_b).reshape(T, B_TILE, H4)
                else:
                    xg_b_last = (mm(scr_f[T - 1].astype(mm_dtype), w_ih_b[:H])
                                 + mm(scr_b[T - 1].astype(mm_dtype), w_ih_b[H:])
                                 + b_b)

            if is_last:
                # Forward recurrence only; the backward output at t = T-1 is
                # the FIRST backward step from zero state, so it is a single
                # cell step on the t = T-1 x-gates (no hh matmul, no scratch).
                h_f, c_f = zeros, zeros
                for t in range(T):
                    gates_f = xpf[t] + mm(h_f.astype(mm_dtype), w_hh_f)
                    h_f, c_f = cell(gates_f, c_f)
                h_f_last = h_f
                h_b_last, _ = cell(xg_b_last, zeros)
            else:
                # Interleaved fwd/bwd recurrence: two independent dependency
                # chains per iteration, so one direction's gate math / MXU
                # drain hides behind the other's matmul.  Outputs go to two
                # lane-offset-0 scratch slabs (no masked stores at offset H).
                # TODO(synk): for large T switch these unrolled Python loops
                # to lax.fori_loop over the scratch refs.
                h_f, c_f = zeros, zeros
                h_b, c_b = zeros, zeros
                for s in range(T):
                    tb = T - 1 - s
                    gates_f = xpf[s] + mm(h_f.astype(mm_dtype), w_hh_f)
                    gates_b = xpb[tb] + mm(h_b.astype(mm_dtype), w_hh_b)
                    h_f, c_f = cell(gates_f, c_f)
                    h_b, c_b = cell(gates_b, c_b)
                    scr_f[s] = h_f
                    scr_b[tb] = h_b

        # ---- fc on last timestep (per-direction matmuls, no lane concat)
        #      + numerically stable log_softmax over the padded lane dim
        #      (pad bias = -1e30 -> exp underflows to 0, real columns exact).
        logits = (mm(h_f_last.astype(mm_dtype), fc_wf_ref[...])
                  + mm(h_b_last.astype(mm_dtype), fc_wb_ref[...])
                  + fc_b_ref[...])
        m = jnp.max(logits, axis=1, keepdims=True)
        lse = m + jnp.log(jnp.sum(jnp.exp(logits - m), axis=1, keepdims=True))
        out_ref[...] = logits - lse

    return kernel


# ----------------------------------------------------------------------------
# Wrapper
# ----------------------------------------------------------------------------
def lstm_model_forward(questions, params, *, n_layers, hidden_dim, output_dim,
                       matmul_dtype=jnp.bfloat16):
    """Full LSTMModel forward.  `questions` is int32 (B, T)."""
    H, O = hidden_dim, output_dim
    H4 = 4 * H
    emb = params["embedding"]
    B, T = questions.shape
    E = emb.shape[1]
    O_PAD = _round_up(max(O, 128), 128)

    # Glue: embedding gather, produced directly time-major (T, B, E).
    x = jnp.take(emb, questions.T, axis=0)

    # Batch tile: multiple of 8 sublanes, cap 256 (fills the 256-wide MXU on
    # v6e/v7x).  If the whole padded batch would fit in a single tile and the
    # batch is non-trivial, halve the tile so the grid has >= 2 parallel
    # steps (lets v7x shard the batch axis across both TensorCores; the cost
    # on single-TC chips is one extra ~0.35us grid step).
    B_TILE = min(256, _round_up(B, 8))
    if _round_up(B, B_TILE) == B_TILE and B_TILE >= 16:
        B_TILE = _round_up((B_TILE + 1) // 2, 8)
    B_pad = _round_up(B, B_TILE)
    if B_pad != B:
        x = jnp.pad(x, ((0, 0), (0, B_pad - B), (0, 0)))
    x = x.astype(matmul_dtype)

    def reorder(w):  # PyTorch gate blocks [i,f,g,o] along axis 0 -> [i,f,o,g]
        i, f, g, o = jnp.split(w, 4, axis=0)
        return jnp.concatenate([i, f, o, g], axis=0)

    def const_spec(shape):
        return pl.BlockSpec(shape, lambda b, _n=len(shape): (0,) * _n)

    kernel_args = [x]
    in_specs = [pl.BlockSpec((T, B_TILE, E), lambda b: (0, b, 0))]

    for l in range(n_layers):
        lw_f = params["lstm"][(l, 0)]
        lw_b = params["lstm"][(l, 1)]
        w_ih_f = reorder(lw_f["w_ih"]).T.astype(matmul_dtype)         # (in, 4H)
        w_ih_b = reorder(lw_b["w_ih"]).T.astype(matmul_dtype)         # (in, 4H)
        b_f = reorder(lw_f["b_ih"] + lw_f["b_hh"]).reshape(1, H4).astype(jnp.float32)
        b_b = reorder(lw_b["b_ih"] + lw_b["b_hh"]).reshape(1, H4).astype(jnp.float32)
        w_hh_f = reorder(lw_f["w_hh"]).T.astype(matmul_dtype)         # (H, 4H)
        w_hh_b = reorder(lw_b["w_hh"]).T.astype(matmul_dtype)         # (H, 4H)
        for a in (w_ih_f, w_ih_b, b_f, b_b, w_hh_f, w_hh_b):
            kernel_args.append(a)
            in_specs.append(const_spec(a.shape))

    # fc split by direction + padded to 128 lanes (pad weights 0, pad bias
    # -1e30 so the in-kernel log_softmax over O_PAD equals log_softmax over O).
    fc_w = params["fc_w"]                                             # (O, 2H)
    fc_wf = jnp.zeros((H, O_PAD), matmul_dtype).at[:, :O].set(
        fc_w[:, :H].T.astype(matmul_dtype))
    fc_wb = jnp.zeros((H, O_PAD), matmul_dtype).at[:, :O].set(
        fc_w[:, H:].T.astype(matmul_dtype))
    fc_b = jnp.full((1, O_PAD), -1e30, jnp.float32).at[0, :O].set(
        params["fc_b"].astype(jnp.float32))
    for a in (fc_wf, fc_wb, fc_b):
        kernel_args.append(a)
        in_specs.append(const_spec(a.shape))

    kernel = _make_lstm_kernel(n_layers, T, B_TILE, H, matmul_dtype)

    scratch_shapes = [pltpu.VMEM((T, B_TILE, H4), jnp.float32)]       # xpf
    if n_layers > 1:
        scratch_shapes += [
            pltpu.VMEM((T, B_TILE, H4), jnp.float32),                 # xpb
            pltpu.VMEM((T, B_TILE, H), jnp.float32),                  # scr_f
            pltpu.VMEM((T, B_TILE, H), jnp.float32),                  # scr_b
        ]

    out = pl.pallas_call(
        kernel,
        grid=(B_pad // B_TILE,),
        out_shape=jax.ShapeDtypeStruct((B_pad, O_PAD), jnp.float32),
        in_specs=in_specs,
        out_specs=pl.BlockSpec((B_TILE, O_PAD), lambda b: (b, 0)),
        scratch_shapes=scratch_shapes,
        compiler_params=pltpu.CompilerParams(
            dimension_semantics=("parallel",),
            vmem_limit_bytes=32 * 1024 * 1024),
    )(*kernel_args)
    return out[:B, :O]


# ----------------------------------------------------------------------------
# Deterministic parameter construction (nn.Embedding / nn.LSTM / nn.Linear)
# ----------------------------------------------------------------------------
def init_params(key, vocab_size, embedding_dim, hidden_dim, n_layers, output_dim):
    E, H, O = embedding_dim, hidden_dim, output_dim
    params = {"lstm": {}}
    k = key

    k, sub = jax.random.split(k)
    params["embedding"] = jax.random.normal(sub, (vocab_size, E), jnp.float32)

    bound = 1.0 / jnp.sqrt(H)
    for l in range(n_layers):
        in_dim = E if l == 0 else 2 * H
        for d in range(2):  # bidirectional
            k, k1, k2, k3, k4 = jax.random.split(k, 5)
            params["lstm"][(l, d)] = {
                "w_ih": jax.random.uniform(k1, (4 * H, in_dim), jnp.float32, -bound, bound),
                "w_hh": jax.random.uniform(k2, (4 * H, H), jnp.float32, -bound, bound),
                "b_ih": jax.random.uniform(k3, (4 * H,), jnp.float32, -bound, bound),
                "b_hh": jax.random.uniform(k4, (4 * H,), jnp.float32, -bound, bound),
            }

    fc_bound = 1.0 / jnp.sqrt(2 * H)
    k, k1, k2 = jax.random.split(k, 3)
    params["fc_w"] = jax.random.uniform(k1, (O, 2 * H), jnp.float32, -fc_bound, fc_bound)
    params["fc_b"] = jax.random.uniform(k2, (O,), jnp.float32, -fc_bound, fc_bound)
    return params


# ----------------------------------------------------------------------------
# Pure-JAX reference (PyTorch gate order / semantics) for correctness check
# ----------------------------------------------------------------------------
def _reference_forward(questions, params, *, n_layers, hidden_dim, output_dim):
    H = hidden_dim
    x = jnp.take(params["embedding"], questions, axis=0)
    B, T, _ = x.shape

    def cell(xt, h, c, w_ih, w_hh, b_ih, b_hh):
        g = xt @ w_ih.T + h @ w_hh.T + b_ih + b_hh
        i = jax.nn.sigmoid(g[:, :H])
        f = jax.nn.sigmoid(g[:, H:2 * H])
        gg = jnp.tanh(g[:, 2 * H:3 * H])
        o = jax.nn.sigmoid(g[:, 3 * H:])
        c = f * c + i * gg
        return o * jnp.tanh(c), c

    layer_in = x
    for l in range(n_layers):
        outs = []
        for d in range(2):
            lw = params["lstm"][(l, d)]
            h = jnp.zeros((B, H)); c = jnp.zeros((B, H))
            seq = range(T) if d == 0 else reversed(range(T))
            hs = [None] * T
            for t in seq:
                h, c = cell(layer_in[:, t, :], h, c, lw["w_ih"], lw["w_hh"],
                            lw["b_ih"], lw["b_hh"])
                hs[t] = h
            outs.append(jnp.stack(hs, axis=1))
        layer_in = jnp.concatenate(outs, axis=-1)
    logits = layer_in[:, -1, :] @ params["fc_w"].T + params["fc_b"]
    return jax.nn.log_softmax(logits, axis=1)


if __name__ == "__main__":
    # Small shapes consistent with the module (seq_length=5 from pad_features).
    batch = 2
    seq_len = 5
    embedding_dim = 16
    hidden_dim = 32
    vocab_size = 50
    output_dim = 6

    key = jax.random.PRNGKey(0)

    for n_layers in (1, 2):
        key, pkey, qkey = jax.random.split(key, 3)
        params = init_params(pkey, vocab_size, embedding_dim, hidden_dim,
                             n_layers, output_dim)
        questions = jax.random.randint(qkey, (batch, seq_len), 0, vocab_size,
                                       dtype=jnp.int32)
        ref = _reference_forward(questions, params, n_layers=n_layers,
                                 hidden_dim=hidden_dim, output_dim=output_dim)

        for mm_dtype, tol in ((jnp.float32, 2e-4), (jnp.bfloat16, 2e-2)):
            fwd = functools.partial(lstm_model_forward, n_layers=n_layers,
                                    hidden_dim=hidden_dim,
                                    output_dim=output_dim,
                                    matmul_dtype=mm_dtype)
            out = jax.block_until_ready(jax.jit(fwd)(questions, params))
            assert out.shape == (batch, output_dim)
            assert jnp.allclose(out, ref, atol=tol, rtol=tol), (
                f"mismatch vs reference (n_layers={n_layers}, dtype={mm_dtype})")

    print("KERNEL_OK")
</pallas_src>

<mosaic_0001>
module attributes {stable_mosaic.version = 11 : i64} {
  func.func @kernel(%arg0: i32, %arg1: memref<5x8x16xf32, #tpu.memory_space<vmem>>, %arg2: memref<16x128xf32, #tpu.memory_space<vmem>>, %arg3: memref<16x128xf32, #tpu.memory_space<vmem>>, %arg4: memref<1x128xf32, #tpu.memory_space<vmem>>, %arg5: memref<1x128xf32, #tpu.memory_space<vmem>>, %arg6: memref<32x128xf32, #tpu.memory_space<vmem>>, %arg7: memref<32x128xf32, #tpu.memory_space<vmem>>, %arg8: memref<32x128xf32, #tpu.memory_space<vmem>>, %arg9: memref<32x128xf32, #tpu.memory_space<vmem>>, %arg10: memref<1x128xf32, #tpu.memory_space<vmem>>, %arg11: memref<8x128xf32, #tpu.memory_space<vmem>>, %arg12: memref<5x8x128xf32, #tpu.memory_space<vmem>>) attributes {dimension_semantics = [#tpu.dimension_semantics<parallel>], iteration_bounds = array<i64: 1>, scalar_prefetch = 0 : i64, scratch_operands = 1 : i64, tpu.core_type = #tpu.core_type<tc>, window_params = [{transform_indices = @transform_0, window_bounds = array<i64: 5, 8, 16>}, {pipeline_mode = #tpu.pipeline_mode<synchronous>, transform_indices = @transform_1, window_bounds = array<i64: 16, 128>}, {pipeline_mode = #tpu.pipeline_mode<synchronous>, transform_indices = @transform_2, window_bounds = array<i64: 16, 128>}, {pipeline_mode = #tpu.pipeline_mode<synchronous>, transform_indices = @transform_3, window_bounds = array<i64: 1, 128>}, {pipeline_mode = #tpu.pipeline_mode<synchronous>, transform_indices = @transform_4, window_bounds = array<i64: 1, 128>}, {pipeline_mode = #tpu.pipeline_mode<synchronous>, transform_indices = @transform_5, window_bounds = array<i64: 32, 128>}, {pipeline_mode = #tpu.pipeline_mode<synchronous>, transform_indices = @transform_6, window_bounds = array<i64: 32, 128>}, {pipeline_mode = #tpu.pipeline_mode<synchronous>, transform_indices = @transform_7, window_bounds = array<i64: 32, 128>}, {pipeline_mode = #tpu.pipeline_mode<synchronous>, transform_indices = @transform_8, window_bounds = array<i64: 32, 128>}, {pipeline_mode = #tpu.pipeline_mode<synchronous>, transform_indices = @transform_9, window_bounds = array<i64: 1, 128>}, {transform_indices = @transform_10, window_bounds = array<i64: 8, 128>}]} {
    %cst = arith.constant 0.000000e+00 : f32
    %0 = vector.broadcast %cst : f32 to vector<8x32xf32>
    %c0 = arith.constant 0 : index
    %c0_0 = arith.constant 0 : index
    %1 = vector.load %arg6[%c0, %c0_0] : memref<32x128xf32, #tpu.memory_space<vmem>>, vector<32x128xf32>
    %c0_1 = arith.constant 0 : index
    %c0_2 = arith.constant 0 : index
    %2 = vector.load %arg4[%c0_1, %c0_2] : memref<1x128xf32, #tpu.memory_space<vmem>>, vector<1x128xf32>
    %c0_3 = arith.constant 0 : index
    %c0_4 = arith.constant 0 : index
    %3 = vector.load %arg5[%c0_3, %c0_4] : memref<1x128xf32, #tpu.memory_space<vmem>>, vector<1x128xf32>
    %c0_5 = arith.constant 0 : index
    %c0_6 = arith.constant 0 : index
    %c0_7 = arith.constant 0 : index
    %4 = vector.load %arg1[%c0_5, %c0_6, %c0_7] : memref<5x8x16xf32, #tpu.memory_space<vmem>>, vector<5x8x16xf32>
    %5 = vector.shape_cast %4 : vector<5x8x16xf32> to vector<40x16xf32>
    %c0_8 = arith.constant 0 : index
    %c0_9 = arith.constant 0 : index
    %6 = vector.load %arg2[%c0_8, %c0_9] : memref<16x128xf32, #tpu.memory_space<vmem>>, vector<16x128xf32>
    %cst_10 = arith.constant dense<0.000000e+00> : vector<40x128xf32>
    %7 = tpu.matmul %5, %6, %cst_10 {dimension_numbers = #tpu.dot_dimension_numbers<[1], [0], [0], [1], [0, 0, 1, 1], [], []>} : vector<40x16xf32>, vector<16x128xf32>, vector<40x128xf32> -> vector<40x128xf32>
    %8 = vector.broadcast %2 : vector<1x128xf32> to vector<40x128xf32>
    %9 = arith.addf %7, %8 : vector<40x128xf32>
    %10 = vector.shape_cast %9 : vector<40x128xf32> to vector<5x8x128xf32>
    %c0_11 = arith.constant 0 : index
    %c0_12 = arith.constant 0 : index
    %c0_13 = arith.constant 0 : index
    %11 = vector.load %arg12[%c0_11, %c0_12, %c0_13] : memref<5x8x128xf32, #tpu.memory_space<vmem>>, vector<5x8x128xf32>
    tpu.vector_store %arg12[%c0_11, %c0_12, %c0_13], %10 {strides = array<i32>} : memref<5x8x128xf32, #tpu.memory_space<vmem>>, vector<5x8x128xf32>,
    %c4 = arith.constant 4 : index
    %c0_14 = arith.constant 0 : index
    %c0_15 = arith.constant 0 : index
    %12 = vector.load %arg1[%c4, %c0_14, %c0_15] : memref<5x8x16xf32, #tpu.memory_space<vmem>>, vector<1x8x16xf32>
    %13 = vector.shape_cast %12 : vector<1x8x16xf32> to vector<8x16xf32>
    %c0_16 = arith.constant 0 : index
    %c0_17 = arith.constant 0 : index
    %14 = vector.load %arg3[%c0_16, %c0_17] : memref<16x128xf32, #tpu.memory_space<vmem>>, vector<16x128xf32>
    %cst_18 = arith.constant dense<0.000000e+00> : vector<8x128xf32>
    %15 = tpu.matmul %13, %14, %cst_18 {dimension_numbers = #tpu.dot_dimension_numbers<[1], [0], [0], [1], [0, 0, 1, 1], [], []>} : vector<8x16xf32>, vector<16x128xf32>, vector<8x128xf32> -> vector<8x128xf32>
    %16 = vector.broadcast %3 : vector<1x128xf32> to vector<8x128xf32>
    %17 = arith.addf %15, %16 : vector<8x128xf32>
    %c0_19 = arith.constant 0 : index
    %c0_20 = arith.constant 0 : index
    %c0_21 = arith.constant 0 : index
    %18 = vector.load %arg12[%c0_19, %c0_20, %c0_21] : memref<5x8x128xf32, #tpu.memory_space<vmem>>, vector<1x8x128xf32>
    %19 = vector.shape_cast %18 : vector<1x8x128xf32> to vector<8x128xf32>
    %cst_22 = arith.constant dense<0.000000e+00> : vector<8x128xf32>
    %20 = tpu.matmul %0, %1, %cst_22 {dimension_numbers = #tpu.dot_dimension_numbers<[1], [0], [0], [1], [0, 0, 1, 1], [], []>} : vector<8x32xf32>, vector<32x128xf32>, vector<8x128xf32> -> vector<8x128xf32>
    %21 = arith.addf %19, %20 : vector<8x128xf32>
    %22 = vector.extract_strided_slice %21 {offsets = [0, 0], sizes = [8, 96], strides = [1, 1]} : vector<8x128xf32> to vector<8x96xf32>
    %23 = arith.negf %22 : vector<8x96xf32>
    %24 = math.exp %23 : vector<8x96xf32>
    %cst_23 = arith.constant 1.000000e+00 : f32
    %25 = vector.broadcast %cst_23 : f32 to vector<8x96xf32>
    %26 = arith.addf %25, %24 : vector<8x96xf32>
    %27 = arith.divf %25, %26 : vector<8x96xf32>
    %28 = vector.extract_strided_slice %21 {offsets = [0, 96], sizes = [8, 32], strides = [1, 1]} : vector<8x128xf32> to vector<8x32xf32>
    %29 = math.tanh %28 : vector<8x32xf32>
    %30 = vector.extract_strided_slice %27 {offsets = [0, 32], sizes = [8, 32], strides = [1, 1]} : vector<8x96xf32> to vector<8x32xf32>
    %31 = arith.mulf %30, %0 : vector<8x32xf32>
    %32 = vector.extract_strided_slice %27 {offsets = [0, 0], sizes = [8, 32], strides = [1, 1]} : vector<8x96xf32> to vector<8x32xf32>
    %33 = arith.mulf %32, %29 : vector<8x32xf32>
    %34 = arith.addf %31, %33 : vector<8x32xf32>
    %35 = vector.extract_strided_slice %27 {offsets = [0, 64], sizes = [8, 32], strides = [1, 1]} : vector<8x96xf32> to vector<8x32xf32>
    %36 = math.tanh %34 : vector<8x32xf32>
    %37 = arith.mulf %35, %36 : vector<8x32xf32>
    %c1 = arith.constant 1 : index
    %c0_24 = arith.constant 0 : index
    %c0_25 = arith.constant 0 : index
    %38 = vector.load %arg12[%c1, %c0_24, %c0_25] : memref<5x8x128xf32, #tpu.memory_space<vmem>>, vector<1x8x128xf32>
    %39 = vector.shape_cast %38 : vector<1x8x128xf32> to vector<8x128xf32>
    %cst_26 = arith.constant dense<0.000000e+00> : vector<8x128xf32>
    %40 = tpu.matmul %37, %1, %cst_26 {dimension_numbers = #tpu.dot_dimension_numbers<[1], [0], [0], [1], [0, 0, 1, 1], [], []>} : vector<8x32xf32>, vector<32x128xf32>, vector<8x128xf32> -> vector<8x128xf32>
    %41 = arith.addf %39, %40 : vector<8x128xf32>
    %42 = vector.extract_strided_slice %41 {offsets = [0, 0], sizes = [8, 96], strides = [1, 1]} : vector<8x128xf32> to vector<8x96xf32>
    %43 = arith.negf %42 : vector<8x96xf32>
    %44 = math.exp %43 : vector<8x96xf32>
    %cst_27 = arith.constant 1.000000e+00 : f32
    %45 = vector.broadcast %cst_27 : f32 to vector<8x96xf32>
    %46 = arith.addf %45, %44 : vector<8x96xf32>
    %47 = arith.divf %45, %46 : vector<8x96xf32>
    %48 = vector.extract_strided_slice %41 {offsets = [0, 96], sizes = [8, 32], strides = [1, 1]} : vector<8x128xf32> to vector<8x32xf32>
    %49 = math.tanh %48 : vector<8x32xf32>
    %50 = vector.extract_strided_slice %47 {offsets = [0, 32], sizes = [8, 32], strides = [1, 1]} : vector<8x96xf32> to vector<8x32xf32>
    %51 = arith.mulf %50, %34 : vector<8x32xf32>
    %52 = vector.extract_strided_slice %47 {offsets = [0, 0], sizes = [8, 32], strides = [1, 1]} : vector<8x96xf32> to vector<8x32xf32>
    %53 = arith.mulf %52, %49 : vector<8x32xf32>
    %54 = arith.addf %51, %53 : vector<8x32xf32>
    %55 = vector.extract_strided_slice %47 {offsets = [0, 64], sizes = [8, 32], strides = [1, 1]} : vector<8x96xf32> to vector<8x32xf32>
    %56 = math.tanh %54 : vector<8x32xf32>
    %57 = arith.mulf %55, %56 : vector<8x32xf32>
    %c2 = arith.constant 2 : index
    %c0_28 = arith.constant 0 : index
    %c0_29 = arith.constant 0 : index
    %58 = vector.load %arg12[%c2, %c0_28, %c0_29] : memref<5x8x128xf32, #tpu.memory_space<vmem>>, vector<1x8x128xf32>
    %59 = vector.shape_cast %58 : vector<1x8x128xf32> to vector<8x128xf32>
    %cst_30 = arith.constant dense<0.000000e+00> : vector<8x128xf32>
    %60 = tpu.matmul %57, %1, %cst_30 {dimension_numbers = #tpu.dot_dimension_numbers<[1], [0], [0], [1], [0, 0, 1, 1], [], []>} : vector<8x32xf32>, vector<32x128xf32>, vector<8x128xf32> -> vector<8x128xf32>
    %61 = arith.addf %59, %60 : vector<8x128xf32>
    %62 = vector.extract_strided_slice %61 {offsets = [0, 0], sizes = [8, 96], strides = [1, 1]} : vector<8x128xf32> to vector<8x96xf32>
    %63 = arith.negf %62 : vector<8x96xf32>
    %64 = math.exp %63 : vector<8x96xf32>
    %cst_31 = arith.constant 1.000000e+00 : f32
    %65 = vector.broadcast %cst_31 : f32 to vector<8x96xf32>
    %66 = arith.addf %65, %64 : vector<8x96xf32>
    %67 = arith.divf %65, %66 : vector<8x96xf32>
    %68 = vector.extract_strided_slice %61 {offsets = [0, 96], sizes = [8, 32], strides = [1, 1]} : vector<8x128xf32> to vector<8x32xf32>
    %69 = math.tanh %68 : vector<8x32xf32>
    %70 = vector.extract_strided_slice %67 {offsets = [0, 32], sizes = [8, 32], strides = [1, 1]} : vector<8x96xf32> to vector<8x32xf32>
    %71 = arith.mulf %70, %54 : vector<8x32xf32>
    %72 = vector.extract_strided_slice %67 {offsets = [0, 0], sizes = [8, 32], strides = [1, 1]} : vector<8x96xf32> to vector<8x32xf32>
    %73 = arith.mulf %72, %69 : vector<8x32xf32>
    %74 = arith.addf %71, %73 : vector<8x32xf32>
    %75 = vector.extract_strided_slice %67 {offsets = [0, 64], sizes = [8, 32], strides = [1, 1]} : vector<8x96xf32> to vector<8x32xf32>
    %76 = math.tanh %74 : vector<8x32xf32>
    %77 = arith.mulf %75, %76 : vector<8x32xf32>
    %c3 = arith.constant 3 : index
    %c0_32 = arith.constant 0 : index
    %c0_33 = arith.constant 0 : index
    %78 = vector.load %arg12[%c3, %c0_32, %c0_33] : memref<5x8x128xf32, #tpu.memory_space<vmem>>, vector<1x8x128xf32>
    %79 = vector.shape_cast %78 : vector<1x8x128xf32> to vector<8x128xf32>
    %cst_34 = arith.constant dense<0.000000e+00> : vector<8x128xf32>
    %80 = tpu.matmul %77, %1, %cst_34 {dimension_numbers = #tpu.dot_dimension_numbers<[1], [0], [0], [1], [0, 0, 1, 1], [], []>} : vector<8x32xf32>, vector<32x128xf32>, vector<8x128xf32> -> vector<8x128xf32>
    %81 = arith.addf %79, %80 : vector<8x128xf32>
    %82 = vector.extract_strided_slice %81 {offsets = [0, 0], sizes = [8, 96], strides = [1, 1]} : vector<8x128xf32> to vector<8x96xf32>
    %83 = arith.negf %82 : vector<8x96xf32>
    %84 = math.exp %83 : vector<8x96xf32>
    %cst_35 = arith.constant 1.000000e+00 : f32
    %85 = vector.broadcast %cst_35 : f32 to vector<8x96xf32>
    %86 = arith.addf %85, %84 : vector<8x96xf32>
    %87 = arith.divf %85, %86 : vector<8x96xf32>
    %88 = vector.extract_strided_slice %81 {offsets = [0, 96], sizes = [8, 32], strides = [1, 1]} : vector<8x128xf32> to vector<8x32xf32>
    %89 = math.tanh %88 : vector<8x32xf32>
    %90 = vector.extract_strided_slice %87 {offsets = [0, 32], sizes = [8, 32], strides = [1, 1]} : vector<8x96xf32> to vector<8x32xf32>
    %91 = arith.mulf %90, %74 : vector<8x32xf32>
    %92 = vector.extract_strided_slice %87 {offsets = [0, 0], sizes = [8, 32], strides = [1, 1]} : vector<8x96xf32> to vector<8x32xf32>
    %93 = arith.mulf %92, %89 : vector<8x32xf32>
    %94 = arith.addf %91, %93 : vector<8x32xf32>
    %95 = vector.extract_strided_slice %87 {offsets = [0, 64], sizes = [8, 32], strides = [1, 1]} : vector<8x96xf32> to vector<8x32xf32>
    %96 = math.tanh %94 : vector<8x32xf32>
    %97 = arith.mulf %95, %96 : vector<8x32xf32>
    %c4_36 = arith.constant 4 : index
    %c0_37 = arith.constant 0 : index
    %c0_38 = arith.constant 0 : index
    %98 = vector.load %arg12[%c4_36, %c0_37, %c0_38] : memref<5x8x128xf32, #tpu.memory_space<vmem>>, vector<1x8x128xf32>
    %99 = vector.shape_cast %98 : vector<1x8x128xf32> to vector<8x128xf32>
    %cst_39 = arith.constant dense<0.000000e+00> : vector<8x128xf32>
    %100 = tpu.matmul %97, %1, %cst_39 {dimension_numbers = #tpu.dot_dimension_numbers<[1], [0], [0], [1], [0, 0, 1, 1], [], []>} : vector<8x32xf32>, vector<32x128xf32>, vector<8x128xf32> -> vector<8x128xf32>
    %101 = arith.addf %99, %100 : vector<8x128xf32>
    %102 = vector.extract_strided_slice %101 {offsets = [0, 0], sizes = [8, 96], strides = [1, 1]} : vector<8x128xf32> to vector<8x96xf32>
    %103 = arith.negf %102 : vector<8x96xf32>
    %104 = math.exp %103 : vector<8x96xf32>
    %cst_40 = arith.constant 1.000000e+00 : f32
    %105 = vector.broadcast %cst_40 : f32 to vector<8x96xf32>
    %106 = arith.addf %105, %104 : vector<8x96xf32>
    %107 = arith.divf %105, %106 : vector<8x96xf32>
    %108 = vector.extract_strided_slice %101 {offsets = [0, 96], sizes = [8, 32], strides = [1, 1]} : vector<8x128xf32> to vector<8x32xf32>
    %109 = math.tanh %108 : vector<8x32xf32>
    %110 = vector.extract_strided_slice %107 {offsets = [0, 32], sizes = [8, 32], strides = [1, 1]} : vector<8x96xf32> to vector<8x32xf32>
    %111 = arith.mulf %110, %94 : vector<8x32xf32>
    %112 = vector.extract_strided_slice %107 {offsets = [0, 0], sizes = [8, 32], strides = [1, 1]} : vector<8x96xf32> to vector<8x32xf32>
    %113 = arith.mulf %112, %109 : vector<8x32xf32>
    %114 = arith.addf %111, %113 : vector<8x32xf32>
    %115 = vector.extract_strided_slice %107 {offsets = [0, 64], sizes = [8, 32], strides = [1, 1]} : vector<8x96xf32> to vector<8x32xf32>
    %116 = math.tanh %114 : vector<8x32xf32>
    %117 = arith.mulf %115, %116 : vector<8x32xf32>
    %118 = vector.extract_strided_slice %17 {offsets = [0, 0], sizes = [8, 96], strides = [1, 1]} : vector<8x128xf32> to vector<8x96xf32>
    %119 = arith.negf %118 : vector<8x96xf32>
    %120 = math.exp %119 : vector<8x96xf32>
    %cst_41 = arith.constant 1.000000e+00 : f32
    %121 = vector.broadcast %cst_41 : f32 to vector<8x96xf32>
    %122 = arith.addf %121, %120 : vector<8x96xf32>
    %123 = arith.divf %121, %122 : vector<8x96xf32>
    %124 = vector.extract_strided_slice %17 {offsets = [0, 96], sizes = [8, 32], strides = [1, 1]} : vector<8x128xf32> to vector<8x32xf32>
    %125 = math.tanh %124 : vector<8x32xf32>
    %126 = vector.extract_strided_slice %123 {offsets = [0, 32], sizes = [8, 32], strides = [1, 1]} : vector<8x96xf32> to vector<8x32xf32>
    %127 = arith.mulf %126, %0 : vector<8x32xf32>
    %128 = vector.extract_strided_slice %123 {offsets = [0, 0], sizes = [8, 32], strides = [1, 1]} : vector<8x96xf32> to vector<8x32xf32>
    %129 = arith.mulf %128, %125 : vector<8x32xf32>
    %130 = arith.addf %127, %129 : vector<8x32xf32>
    %131 = vector.extract_strided_slice %123 {offsets = [0, 64], sizes = [8, 32], strides = [1, 1]} : vector<8x96xf32> to vector<8x32xf32>
    %132 = math.tanh %130 : vector<8x32xf32>
    %133 = arith.mulf %131, %132 : vector<8x32xf32>
    %c0_42 = arith.constant 0 : index
    %c0_43 = arith.constant 0 : index
    %134 = vector.load %arg8[%c0_42, %c0_43] : memref<32x128xf32, #tpu.memory_space<vmem>>, vector<32x128xf32>
    %cst_44 = arith.constant dense<0.000000e+00> : vector<8x128xf32>
    %135 = tpu.matmul %117, %134, %cst_44 {dimension_numbers = #tpu.dot_dimension_numbers<[1], [0], [0], [1], [0, 0, 1, 1], [], []>} : vector<8x32xf32>, vector<32x128xf32>, vector<8x128xf32> -> vector<8x128xf32>
    %c0_45 = arith.constant 0 : index
    %c0_46 = arith.constant 0 : index
    %136 = vector.load %arg9[%c0_45, %c0_46] : memref<32x128xf32, #tpu.memory_space<vmem>>, vector<32x128xf32>
    %cst_47 = arith.constant dense<0.000000e+00> : vector<8x128xf32>
    %137 = tpu.matmul %133, %136, %cst_47 {dimension_numbers = #tpu.dot_dimension_numbers<[1], [0], [0], [1], [0, 0, 1, 1], [], []>} : vector<8x32xf32>, vector<32x128xf32>, vector<8x128xf32> -> vector<8x128xf32>
    %138 = arith.addf %135, %137 : vector<8x128xf32>
    %c0_48 = arith.constant 0 : index
    %c0_49 = arith.constant 0 : index
    %139 = vector.load %arg10[%c0_48, %c0_49] : memref<1x128xf32, #tpu.memory_space<vmem>>, vector<1x128xf32>
    %140 = vector.broadcast %139 : vector<1x128xf32> to vector<8x128xf32>
    %141 = arith.addf %138, %140 : vector<8x128xf32>
    %cst_50 = arith.constant dense<0xFF800000> : vector<8xf32>
    %142 = vector.multi_reduction <maximumf>, %141, %cst_50 [1] : vector<8x128xf32> to vector<8xf32>
    %143 = vector.shape_cast %142 : vector<8xf32> to vector<8x1xf32>
    %144 = vector.broadcast %143 : vector<8x1xf32> to vector<8x128xf32>
    %145 = arith.subf %141, %144 : vector<8x128xf32>
    %146 = math.exp %145 : vector<8x128xf32>
    %cst_51 = arith.constant dense<0.000000e+00> : vector<8xf32>
    %147 = vector.multi_reduction <add>, %146, %cst_51 [1] : vector<8x128xf32> to vector<8xf32>
    %148 = vector.shape_cast %147 : vector<8xf32> to vector<8x1xf32>
    %149 = math.log %148 : vector<8x1xf32>
    %150 = arith.addf %143, %149 : vector<8x1xf32>
    %151 = vector.broadcast %150 : vector<8x1xf32> to vector<8x128xf32>
    %152 = arith.subf %141, %151 : vector<8x128xf32>
    %c0_52 = arith.constant 0 : index
    %c0_53 = arith.constant 0 : index
    %153 = vector.load %arg11[%c0_52, %c0_53] : memref<8x128xf32, #tpu.memory_space<vmem>>, vector<8x128xf32>
    tpu.vector_store %arg11[%c0_52, %c0_53], %152 {strides = array<i32>} : memref<8x128xf32, #tpu.memory_space<vmem>>, vector<8x128xf32>,
    return
  }
  func.func @transform_0(%arg0: i32) -> (i32, i32, i32) {
    %c0_i32 = arith.constant 0 : i32
    %c0_i32_0 = arith.constant 0 : i32
    %c0_i32_1 = arith.constant 0 : i32
    return %c0_i32, %arg0, %c0_i32_0 : i32, i32, i32
  }
  func.func @transform_1(%arg0: i32) -> (i32, i32) {
    %c0_i32 = arith.constant 0 : i32
    %c0_i32_0 = arith.constant 0 : i32
    %c0_i32_1 = arith.constant 0 : i32
    return %c0_i32, %c0_i32_0 : i32, i32
  }
  func.func @transform_2(%arg0: i32) -> (i32, i32) {
    %c0_i32 = arith.constant 0 : i32
    %c0_i32_0 = arith.constant 0 : i32
    %c0_i32_1 = arith.constant 0 : i32
    return %c0_i32, %c0_i32_0 : i32, i32
  }
  func.func @transform_3(%arg0: i32) -> (i32, i32) {
    %c0_i32 = arith.constant 0 : i32
    %c0_i32_0 = arith.constant 0 : i32
    %c0_i32_1 = arith.constant 0 : i32
    return %c0_i32, %c0_i32_0 : i32, i32
  }
  func.func @transform_4(%arg0: i32) -> (i32, i32) {
    %c0_i32 = arith.constant 0 : i32
    %c0_i32_0 = arith.constant 0 : i32
    %c0_i32_1 = arith.constant 0 : i32
    return %c0_i32, %c0_i32_0 : i32, i32
  }
  func.func @transform_5(%arg0: i32) -> (i32, i32) {
    %c0_i32 = arith.constant 0 : i32
    %c0_i32_0 = arith.constant 0 : i32
    %c0_i32_1 = arith.constant 0 : i32
    return %c0_i32, %c0_i32_0 : i32, i32
  }
  func.func @transform_6(%arg0: i32) -> (i32, i32) {
    %c0_i32 = arith.constant 0 : i32
    %c0_i32_0 = arith.constant 0 : i32
    %c0_i32_1 = arith.constant 0 : i32
    return %c0_i32, %c0_i32_0 : i32, i32
  }
  func.func @transform_7(%arg0: i32) -> (i32, i32) {
    %c0_i32 = arith.constant 0 : i32
    %c0_i32_0 = arith.constant 0 : i32
    %c0_i32_1 = arith.constant 0 : i32
    return %c0_i32, %c0_i32_0 : i32, i32
  }
  func.func @transform_8(%arg0: i32) -> (i32, i32) {
    %c0_i32 = arith.constant 0 : i32
    %c0_i32_0 = arith.constant 0 : i32
    %c0_i32_1 = arith.constant 0 : i32
    return %c0_i32, %c0_i32_0 : i32, i32
  }
  func.func @transform_9(%arg0: i32) -> (i32, i32) {
    %c0_i32 = arith.constant 0 : i32
    %c0_i32_0 = arith.constant 0 : i32
    %c0_i32_1 = arith.constant 0 : i32
    return %c0_i32, %c0_i32_0 : i32, i32
  }
  func.func @transform_10(%arg0: i32) -> (i32, i32) {
    %c0_i32 = arith.constant 0 : i32
    %c0_i32_0 = arith.constant 0 : i32
    return %arg0, %c0_i32 : i32, i32
  }
}

</mosaic_0001>

<llo_original>
// kernel: lstm_model_forward.1
$region0: #{lstm_model_forward.1}
  #allocation0 [shape = 'u32[]', space=smem, size = 0x4, offset = 0x4, fixed_abs, tag = 'smem constant byte address 0x4 - core index']
  #allocation1 [shape = 'u32[144,128]{1,0:T(1,128)}', space=vmem, size = 0x12000, scoped, tag = 'internal scratch']
  #allocation2 [shape = 'f32[5,8,128]{2,1,0:T(8,128)}', space=vmem, size = 0x5000, scoped, tag = 'scratch operand']
  %s0 = inlined_call_operand.vmem [shape: f32[5,8,16], index: 0, kind: input, shape index: {}]
  %s1 = inlined_call_operand.vmem [shape: f32[16,128], index: 1, kind: input, shape index: {}]
  %s2 = inlined_call_operand.vmem [shape: f32[16,128], index: 2, kind: input, shape index: {}]
  %s3 = inlined_call_operand.vmem [shape: f32[1,128], index: 3, kind: input, shape index: {}]
  %s4 = inlined_call_operand.vmem [shape: f32[1,128], index: 4, kind: input, shape index: {}]
  %s5 = inlined_call_operand.vmem [shape: f32[32,128], index: 5, kind: input, shape index: {}]
  %s6 = inlined_call_operand.vmem [shape: f32[32,128], index: 6, kind: input, shape index: {}]
  %s7 = inlined_call_operand.vmem [shape: f32[32,128], index: 7, kind: input, shape index: {}]
  %s8 = inlined_call_operand.vmem [shape: f32[32,128], index: 8, kind: input, shape index: {}]
  %s9 = inlined_call_operand.vmem [shape: f32[1,128], index: 9, kind: input, shape index: {}]
  %s10 = inlined_call_operand.vmem [shape: f32[8,128], index: 10, kind: output, shape index: {}]
  %s11 = sld [smem:[#allocation0]]
  $region50: #{lstm_model_forward.1} parent=0
    _
  %s13 = ssub.s32 1, %s11
  %s14 = scalar_select 0, %s13, %s11
  // Predicated region
  $region2: #{lstm_model_forward.1} parent=0 // pred_check
    _
  $region3: #{lstm_model_forward.1} parent=0 // pred_check_branch
    %16 = sbr.rel (0) target = $region5
  $region4: #{lstm_model_forward.1} parent=0 // pred_region
    _
  $region5: #{lstm_model_forward.1} parent=0 // pred_fallthru
    _
  // Predicated region
  $region6: #{lstm_model_forward.1} parent=0 // pred_check
    _
  $region7: #{lstm_model_forward.1} parent=0 // pred_check_branch
    %18 = sbr.rel (0) target = $region9
  $region8: #{lstm_model_forward.1} parent=0 // pred_region
    _
  $region9: #{lstm_model_forward.1} parent=0 // pred_fallthru
    _
  // Predicated region
  $region10: #{lstm_model_forward.1} parent=0 // pred_check
    _
  $region11: #{lstm_model_forward.1} parent=0 // pred_check_branch
    %20 = sbr.rel (0) target = $region13
  $region12: #{lstm_model_forward.1} parent=0 // pred_region
    _
  $region13: #{lstm_model_forward.1} parent=0 // pred_fallthru
    _
  // Predicated region
  $region14: #{lstm_model_forward.1} parent=0 // pred_check
    _
  $region15: #{lstm_model_forward.1} parent=0 // pred_check_branch
    %22 = sbr.rel (0) target = $region17
  $region16: #{lstm_model_forward.1} parent=0 // pred_region
    _
  $region17: #{lstm_model_forward.1} parent=0 // pred_fallthru
    _
  // Predicated region
  $region18: #{lstm_model_forward.1} parent=0 // pred_check
    _
  $region19: #{lstm_model_forward.1} parent=0 // pred_check_branch
    %24 = sbr.rel (0) target = $region21
  $region20: #{lstm_model_forward.1} parent=0 // pred_region
    _
  $region21: #{lstm_model_forward.1} parent=0 // pred_fallthru
    _
  // Predicated region
  $region22: #{lstm_model_forward.1} parent=0 // pred_check
    _
  $region23: #{lstm_model_forward.1} parent=0 // pred_check_branch
    %26 = sbr.rel (0) target = $region25
  $region24: #{lstm_model_forward.1} parent=0 // pred_region
    _
  $region25: #{lstm_model_forward.1} parent=0 // pred_fallthru
    _
  // Predicated region
  $region26: #{lstm_model_forward.1} parent=0 // pred_check
    _
  $region27: #{lstm_model_forward.1} parent=0 // pred_check_branch
    %28 = sbr.rel (0) target = $region29
  $region28: #{lstm_model_forward.1} parent=0 // pred_region
    _
  $region29: #{lstm_model_forward.1} parent=0 // pred_fallthru
    _
  // Predicated region
  $region30: #{lstm_model_forward.1} parent=0 // pred_check
    _
  $region31: #{lstm_model_forward.1} parent=0 // pred_check_branch
    %30 = sbr.rel (0) target = $region33
  $region32: #{lstm_model_forward.1} parent=0 // pred_region
    _
  $region33: #{lstm_model_forward.1} parent=0 // pred_fallthru
    _
  // Predicated region
  $region34: #{lstm_model_forward.1} parent=0 // pred_check
    _
  $region35: #{lstm_model_forward.1} parent=0 // pred_check_branch
    %32 = sbr.rel (0) target = $region37
  $region36: #{lstm_model_forward.1} parent=0 // pred_region
    _
  $region37: #{lstm_model_forward.1} parent=0 // pred_fallthru
    _
  // Predicated region
  $region38: #{lstm_model_forward.1} parent=0 // pred_check
    _
  $region39: #{lstm_model_forward.1} parent=0 // pred_check_branch
    %34 = sbr.rel (0) target = $region41
  $region40: #{lstm_model_forward.1} parent=0 // pred_region
    _
  $region41: #{lstm_model_forward.1} parent=0 // pred_fallthru
    _
  %v35 = vld [vmem:[%s5] sm:$0xff]
  %v36 = vld [vmem:[%s5 + $0x8] sm:$0xff]
  %v37 = vld [vmem:[%s5 + $0x10] sm:$0xff]
  %v38 = vld [vmem:[%s5 + $0x18] sm:$0xff]
  %v39 = vld [vmem:[%s3] sm:$0x1]
  %v40 = vld [vmem:[%s4] sm:$0x1]
  %v41 = vld [vmem:[%s0] sm:$0xff]
  %v42 = vld [vmem:[%s0 + $0x8] sm:$0xff]
  %v43 = vld [vmem:[%s0 + $0x10] sm:$0xff]
  %v44 = vld [vmem:[%s0 + $0x18] sm:$0xff]
  %v45 = vld [vmem:[%s0 + $0x20] sm:$0xff]
  %v46 = vld [vmem:[%s1] sm:$0xff]
  %v47 = vld [vmem:[%s1 + $0x8] sm:$0xff]
  %v49 = vlaneseq
  %v50 = vshrl.u32 %v49, 7
  %v51 = vsub.s32 0, %v50
  %v52 = vrot.slane %v39, %v51
  %vm54 = vcmask 130048
  %v56 = vsel %vm54, %v41, 0
  %v59 = vsel %vm54, %v42, 0
  %v62 = vsel %vm54, %v43, 0
  %v65 = vsel %vm54, %v44, 0
  %v68 = vsel %vm54, %v45, 0
  %70 = vmatprep.subr.mxu0 0.0
  %71 = vmatpush1.msra.mxu0 0.0
  %72 = vmatprep.subr.mxu0 0.0
  %73 = vmatpush1.msra.mxu0 0.0
  %74 = vmatprep.subr.mxu0 0.0
  %75 = vmatpush1.msra.mxu0 0.0
  %76 = vmatprep.subr.mxu0 0.0
  %77 = vmatpush1.msra.mxu0 0.0
  %78 = vmatprep.subr.mxu0 0.0
  %79 = vmatpush1.msra.mxu0 0.0
  %80 = vmatprep.subr.mxu0 0.0
  %81 = vmatpush1.msra.mxu0 0.0
  %82 = vmatprep.subr.mxu0 0.0
  %83 = vmatpush1.msra.mxu0 0.0
  %84 = vmatprep.subr.mxu0 0.0
  %85 = vmatpush1.msra.mxu0 0.0
  %86 = vmatprep.subr.mxu0 0.0
  %87 = vmatpush1.msra.mxu0 0.0
  %88 = vmatprep.subr.mxu0 0.0
  %89 = vmatpush1.msra.mxu0 0.0
  %90 = vmatprep.subr.mxu0 0.0
  %91 = vmatpush1.msra.mxu0 0.0
  %92 = vmatprep.subr.mxu0 0.0
  %93 = vmatpush1.msra.mxu0 0.0
  %94 = vmatprep.subr.mxu0 0.0
  %95 = vmatpush1.msra.mxu0 0.0
  %96 = vmatprep.subr.mxu0 0.0
  %97 = vmatpush1.msra.mxu0 0.0
  %98 = vmatprep.subr.mxu0 0.0
  %99 = vmatpush1.msra.mxu0 %v47
  %100 = vmatprep.subr.mxu0 0.0
  %101 = vmatpush1.msra.mxu0 %v46
  %102 = vmatprep.subr.mxu0 0.0
  %103 = vmatpush2.msra.mxu0 0.0
  %104 = vmatprep.subr.mxu0 0.0
  %105 = vmatpush2.msra.mxu0 0.0
  %106 = vmatprep.subr.mxu0 0.0
  %107 = vmatpush2.msra.mxu0 0.0
  %108 = vmatprep.subr.mxu0 0.0
  %109 = vmatpush2.msra.mxu0 0.0
  %110 = vmatprep.subr.mxu0 0.0
  %111 = vmatpush2.msra.mxu0 0.0
  %112 = vmatprep.subr.mxu0 0.0
  %113 = vmatpush2.msra.mxu0 0.0
  %114 = vmatprep.subr.mxu0 0.0
  %115 = vmatpush2.msra.mxu0 0.0
  %116 = vmatprep.subr.mxu0 0.0
  %117 = vmatpush2.msra.mxu0 0.0
  %118 = vmatprep.subr.mxu0 0.0
  %119 = vmatpush2.msra.mxu0 0.0
  %120 = vmatprep.subr.mxu0 0.0
  %121 = vmatpush2.msra.mxu0 0.0
  %122 = vmatprep.subr.mxu0 0.0
  %123 = vmatpush2.msra.mxu0 0.0
  %124 = vmatprep.subr.mxu0 0.0
  %125 = vmatpush2.msra.mxu0 0.0
  %126 = vmatprep.subr.mxu0 0.0
  %127 = vmatpush2.msra.mxu0 0.0
  %128 = vmatprep.subr.mxu0 0.0
  %129 = vmatpush2.msra.mxu0 0.0
  %130 = vmatprep.subr.mxu0 0.0
  %131 = vmatpush2.msra.mxu0 0.0
  %132 = vmatprep.subr.mxu0 0.0
  %133 = vmatpush2.msra.mxu0 0.0
  %134 = vmatprep.mubr.f32.mxu0 0.0
  %135 = vmatmul.mubr.f32.gmra.mxu0 %v56
  %v136 = vpop.f32.mrf.mxu0
  %v137 = vadd.f32 %v52, %v136
  %v138 = vpop.f32.mrf.mxu0
  %139 = vmatprep.mubr.f32.mxu0 0.0
  %140 = vmatmul.mubr.f32.gmra.mxu0 %v59
  %v141 = vpop.f32.mrf.mxu0
  %v142 = vadd.f32 %v52, %v141
  %v143 = vpop.f32.mrf.mxu0
  %144 = vmatprep.mubr.f32.mxu0 0.0
  %145 = vmatmul.mubr.f32.gmra.mxu0 %v62
  %v146 = vpop.f32.mrf.mxu0
  %v147 = vadd.f32 %v52, %v146
  %v148 = vpop.f32.mrf.mxu0
  %149 = vmatprep.mubr.f32.mxu0 0.0
  %150 = vmatmul.mubr.f32.gmra.mxu0 %v65
  %v151 = vpop.f32.mrf.mxu0
  %v152 = vadd.f32 %v52, %v151
  %v153 = vpop.f32.mrf.mxu0
  %154 = vmatprep.mubr.f32.mxu0 0.0
  %155 = vmatmul.mubr.f32.gmra.mxu0 %v68
  %v156 = vpop.f32.mrf.mxu0
  %v157 = vadd.f32 %v52, %v156
  %v158 = vpop.f32.mrf.mxu0
  %159 = vdwg.mxu0
  %160 = vst [vmem:[#allocation2] sm:$0xff] %v137
  %161 = vst [vmem:[#allocation2 + $0x8] sm:$0xff] %v142
  %162 = vst [vmem:[#allocation2 + $0x10] sm:$0xff] %v147
  %163 = vst [vmem:[#allocation2 + $0x18] sm:$0xff] %v152
  %164 = vst [vmem:[#allocation2 + $0x20] sm:$0xff] %v157
  %s165 = scalar_lea.vmem %s0, 32
  %v166 = vld [vmem:[%s165] sm:$0xff]
  %v167 = vld [vmem:[%s2] sm:$0xff]
  %v168 = vld [vmem:[%s2 + $0x8] sm:$0xff]
  %v170 = vlaneseq
  %v171 = vshrl.u32 %v170, 7
  %v172 = vsub.s32 0, %v171
  %v173 = vrot.slane %v40, %v172
  %v176 = vsel %vm54, %v166, 0
  %178 = vmatprep.subr.mxu0 0.0
  %179 = vmatpush1.msra.mxu0 0.0
  %180 = vmatprep.subr.mxu0 0.0
  %181 = vmatpush1.msra.mxu0 0.0
  %182 = vmatprep.subr.mxu0 0.0
  %183 = vmatpush1.msra.mxu0 0.0
  %184 = vmatprep.subr.mxu0 0.0
  %185 = vmatpush1.msra.mxu0 0.0
  %186 = vmatprep.subr.mxu0 0.0
  %187 = vmatpush1.msra.mxu0 0.0
  %188 = vmatprep.subr.mxu0 0.0
  %189 = vmatpush1.msra.mxu0 0.0
  %190 = vmatprep.subr.mxu0 0.0
  %191 = vmatpush1.msra.mxu0 0.0
  %192 = vmatprep.subr.mxu0 0.0
  %193 = vmatpush1.msra.mxu0 0.0
  %194 = vmatprep.subr.mxu0 0.0
  %195 = vmatpush1.msra.mxu0 0.0
  %196 = vmatprep.subr.mxu0 0.0
  %197 = vmatpush1.msra.mxu0 0.0
  %198 = vmatprep.subr.mxu0 0.0
  %199 = vmatpush1.msra.mxu0 0.0
  %200 = vmatprep.subr.mxu0 0.0
  %201 = vmatpush1.msra.mxu0 0.0
  %202 = vmatprep.subr.mxu0 0.0
  %203 = vmatpush1.msra.mxu0 0.0
  %204 = vmatprep.subr.mxu0 0.0
  %205 = vmatpush1.msra.mxu0 0.0
  %206 = vmatprep.subr.mxu0 0.0
  %207 = vmatpush1.msra.mxu0 %v168
  %208 = vmatprep.subr.mxu0 0.0
  %209 = vmatpush1.msra.mxu0 %v167
  %210 = vmatprep.subr.mxu0 0.0
  %211 = vmatpush2.msra.mxu0 0.0
  %212 = vmatprep.subr.mxu0 0.0
  %213 = vmatpush2.msra.mxu0 0.0
  %214 = vmatprep.subr.mxu0 0.0
  %215 = vmatpush2.msra.mxu0 0.0
  %216 = vmatprep.subr.mxu0 0.0
  %217 = vmatpush2.msra.mxu0 0.0
  %218 = vmatprep.subr.mxu0 0.0
  %219 = vmatpush2.msra.mxu0 0.0
  %220 = vmatprep.subr.mxu0 0.0
  %221 = vmatpush2.msra.mxu0 0.0
  %222 = vmatprep.subr.mxu0 0.0
  %223 = vmatpush2.msra.mxu0 0.0
  %224 = vmatprep.subr.mxu0 0.0
  %225 = vmatpush2.msra.mxu0 0.0
  %226 = vmatprep.subr.mxu0 0.0
  %227 = vmatpush2.msra.mxu0 0.0
  %228 = vmatprep.subr.mxu0 0.0
  %229 = vmatpush2.msra.mxu0 0.0
  %230 = vmatprep.subr.mxu0 0.0
  %231 = vmatpush2.msra.mxu0 0.0
  %232 = vmatprep.subr.mxu0 0.0
  %233 = vmatpush2.msra.mxu0 0.0
  %234 = vmatprep.subr.mxu0 0.0
  %235 = vmatpush2.msra.mxu0 0.0
  %236 = vmatprep.subr.mxu0 0.0
  %237 = vmatpush2.msra.mxu0 0.0
  %238 = vmatprep.subr.mxu0 0.0
  %239 = vmatpush2.msra.mxu0 0.0
  %240 = vmatprep.subr.mxu0 0.0
  %241 = vmatpush2.msra.mxu0 0.0
  %242 = vmatprep.mubr.f32.mxu0 0.0
  %243 = vmatmul.mubr.f32.gmra.mxu0 %v176
  %v244 = vpop.f32.mrf.mxu0
  %v245 = vadd.f32 %v173, %v244
  %v246 = vpop.f32.mrf.mxu0
  %247 = vdwg.mxu0
  %v248 = vld [vmem:[#allocation2] sm:$0xff]
  %vm249 = vcmask 261120
  %v251 = vsel %vm249, 0.0, 0
  %253 = vmatprep.subr.mxu0 0.0
  %254 = vmatpush1.msra.mxu0 0.0
  %255 = vmatprep.subr.mxu0 0.0
  %256 = vmatpush1.msra.mxu0 0.0
  %257 = vmatprep.subr.mxu0 0.0
  %258 = vmatpush1.msra.mxu0 0.0
  %259 = vmatprep.subr.mxu0 0.0
  %260 = vmatpush1.msra.mxu0 0.0
  %261 = vmatprep.subr.mxu0 0.0
  %262 = vmatpush1.msra.mxu0 0.0
  %263 = vmatprep.subr.mxu0 0.0
  %264 = vmatpush1.msra.mxu0 0.0
  %265 = vmatprep.subr.mxu0 0.0
  %266 = vmatpush1.msra.mxu0 0.0
  %267 = vmatprep.subr.mxu0 0.0
  %268 = vmatpush1.msra.mxu0 0.0
  %269 = vmatprep.subr.mxu0 0.0
  %270 = vmatpush1.msra.mxu0 0.0
  %271 = vmatprep.subr.mxu0 0.0
  %272 = vmatpush1.msra.mxu0 0.0
  %273 = vmatprep.subr.mxu0 0.0
  %274 = vmatpush1.msra.mxu0 0.0
  %275 = vmatprep.subr.mxu0 0.0
  %276 = vmatpush1.msra.mxu0 0.0
  %277 = vmatprep.subr.mxu0 0.0
  %278 = vmatpush1.msra.mxu0 %v38
  %279 = vmatprep.subr.mxu0 0.0
  %280 = vmatpush1.msra.mxu0 %v37
  %281 = vmatprep.subr.mxu0 0.0
  %282 = vmatpush1.msra.mxu0 %v36
  %283 = vmatprep.subr.mxu0 0.0
  %284 = vmatpush1.msra.mxu0 %v35
  %285 = vmatprep.subr.mxu0 0.0
  %286 = vmatpush2.msra.mxu0 0.0
  %287 = vmatprep.subr.mxu0 0.0
  %288 = vmatpush2.msra.mxu0 0.0
  %289 = vmatprep.subr.mxu0 0.0
  %290 = vmatpush2.msra.mxu0 0.0
  %291 = vmatprep.subr.mxu0 0.0
  %292 = vmatpush2.msra.mxu0 0.0
  %293 = vmatprep.subr.mxu0 0.0
  %294 = vmatpush2.msra.mxu0 0.0
  %295 = vmatprep.subr.mxu0 0.0
  %296 = vmatpush2.msra.mxu0 0.0
  %297 = vmatprep.subr.mxu0 0.0
  %298 = vmatpush2.msra.mxu0 0.0
  %299 = vmatprep.subr.mxu0 0.0
  %300 = vmatpush2.msra.mxu0 0.0
  %301 = vmatprep.subr.mxu0 0.0
  %302 = vmatpush2.msra.mxu0 0.0
  %303 = vmatprep.subr.mxu0 0.0
  %304 = vmatpush2.msra.mxu0 0.0
  %305 = vmatprep.subr.mxu0 0.0
  %306 = vmatpush2.msra.mxu0 0.0
  %307 = vmatprep.subr.mxu0 0.0
  %308 = vmatpush2.msra.mxu0 0.0
  %309 = vmatprep.subr.mxu0 0.0
  %310 = vmatpush2.msra.mxu0 0.0
  %311 = vmatprep.subr.mxu0 0.0
  %312 = vmatpush2.msra.mxu0 0.0
  %313 = vmatprep.subr.mxu0 0.0
  %314 = vmatpush2.msra.mxu0 0.0
  %315 = vmatprep.subr.mxu0 0.0
  %316 = vmatpush2.msra.mxu0 0.0
  %317 = vmatprep.mubr.f32.mxu0 0.0
  %318 = vmatmul.mubr.f32.gmra.mxu0 %v251
  %v319 = vpop.f32.mrf.mxu0
  %v320 = vadd.f32 0.0, %v319
  %v321 = vpop.f32.mrf.mxu0
  %322 = vdwg.mxu0
  %v323 = vadd.f32 %v248, %v320
  %v324 = vxor.u32 %v323, 2147483648
  %v325 = vmul.f32 %v324, 1.442695
  %v326 = vpow.pop %v325
  %v327 = vadd.f32 %v326, 1.0
  %v328 = vrcp.pop %v327
  %v329 = vmul.f32 1.0, %v328
  %v330 = vtanh.pop %v323
  %v331 = vmul.f32 %v329, 0.0
  %333 = vrot.lane.b32.xlu0 %v330, 32
  %v334 = vpop.permute.xlu0 %333
  %v336 = vmul.f32 %v329, %v334
  %338 = vrot.lane.b32.xlu0 %v336, 32
  %v339 = vpop.permute.xlu0 %338
  %v341 = vadd.f32 %v331, %v339
  %v342 = vtanh.pop %v341
  %344 = vrot.lane.b32.xlu0 %v342, 32
  %v345 = vpop.permute.xlu0 %344
  %v347 = vmul.f32 %v329, %v345
  %s348 = scalar_lea.vmem [#allocation2], 8
  %v349 = vld [vmem:[%s348] sm:$0xff]
  %351 = vrot.lane.b32.xlu0 %v347, 64
  %v352 = vpop.permute.xlu0 %351
  %v353 = vsel %vm249, %v352, 0
  %355 = vmatprep.subr.mxu0 0.0
  %356 = vmatpush1.msra.mxu0 0.0
  %357 = vmatprep.subr.mxu0 0.0
  %358 = vmatpush1.msra.mxu0 0.0
  %359 = vmatprep.subr.mxu0 0.0
  %360 = vmatpush1.msra.mxu0 0.0
  %361 = vmatprep.subr.mxu0 0.0
  %362 = vmatpush1.msra.mxu0 0.0
  %363 = vmatprep.subr.mxu0 0.0
  %364 = vmatpush1.msra.mxu0 0.0
  %365 = vmatprep.subr.mxu0 0.0
  %366 = vmatpush1.msra.mxu0 0.0
  %367 = vmatprep.subr.mxu0 0.0
  %368 = vmatpush1.msra.mxu0 0.0
  %369 = vmatprep.subr.mxu0 0.0
  %370 = vmatpush1.msra.mxu0 0.0
  %371 = vmatprep.subr.mxu0 0.0
  %372 = vmatpush1.msra.mxu0 0.0
  %373 = vmatprep.subr.mxu0 0.0
  %374 = vmatpush1.msra.mxu0 0.0
  %375 = vmatprep.subr.mxu0 0.0
  %376 = vmatpush1.msra.mxu0 0.0
  %377 = vmatprep.subr.mxu0 0.0
  %378 = vmatpush1.msra.mxu0 0.0
  %379 = vmatprep.subr.mxu0 0.0
  %380 = vmatpush1.msra.mxu0 %v38
  %381 = vmatprep.subr.mxu0 0.0
  %382 = vmatpush1.msra.mxu0 %v37
  %383 = vmatprep.subr.mxu0 0.0
  %384 = vmatpush1.msra.mxu0 %v36
  %385 = vmatprep.subr.mxu0 0.0
  %386 = vmatpush1.msra.mxu0 %v35
  %387 = vmatprep.subr.mxu0 0.0
  %388 = vmatpush2.msra.mxu0 0.0
  %389 = vmatprep.subr.mxu0 0.0
  %390 = vmatpush2.msra.mxu0 0.0
  %391 = vmatprep.subr.mxu0 0.0
  %392 = vmatpush2.msra.mxu0 0.0
  %393 = vmatprep.subr.mxu0 0.0
  %394 = vmatpush2.msra.mxu0 0.0
  %395 = vmatprep.subr.mxu0 0.0
  %396 = vmatpush2.msra.mxu0 0.0
  %397 = vmatprep.subr.mxu0 0.0
  %398 = vmatpush2.msra.mxu0 0.0
  %399 = vmatprep.subr.mxu0 0.0
  %400 = vmatpush2.msra.mxu0 0.0
  %401 = vmatprep.subr.mxu0 0.0
  %402 = vmatpush2.msra.mxu0 0.0
  %403 = vmatprep.subr.mxu0 0.0
  %404 = vmatpush2.msra.mxu0 0.0
  %405 = vmatprep.subr.mxu0 0.0
  %406 = vmatpush2.msra.mxu0 0.0
  %407 = vmatprep.subr.mxu0 0.0
  %408 = vmatpush2.msra.mxu0 0.0
  %409 = vmatprep.subr.mxu0 0.0
  %410 = vmatpush2.msra.mxu0 0.0
  %411 = vmatprep.subr.mxu0 0.0
  %412 = vmatpush2.msra.mxu0 0.0
  %413 = vmatprep.subr.mxu0 0.0
  %414 = vmatpush2.msra.mxu0 0.0
  %415 = vmatprep.subr.mxu0 0.0
  %416 = vmatpush2.msra.mxu0 0.0
  %417 = vmatprep.subr.mxu0 0.0
  %418 = vmatpush2.msra.mxu0 0.0
  %419 = vmatprep.mubr.f32.mxu0 0.0
  %420 = vmatmul.mubr.f32.gmra.mxu0 %v353
  %v421 = vpop.f32.mrf.mxu0
  %v422 = vadd.f32 0.0, %v421
  %v423 = vpop.f32.mrf.mxu0
  %424 = vdwg.mxu0
  %v425 = vadd.f32 %v349, %v422
  %v426 = vxor.u32 %v425, 2147483648
  %v427 = vmul.f32 %v426, 1.442695
  %v428 = vpow.pop %v427
  %v429 = vadd.f32 %v428, 1.0
  %v430 = vrcp.pop %v429
  %v431 = vmul.f32 1.0, %v430
  %v432 = vtanh.pop %v425
  %v433 = vmul.f32 %v431, %v341
  %435 = vrot.lane.b32.xlu0 %v432, 32
  %v436 = vpop.permute.xlu0 %435
  %v438 = vmul.f32 %v431, %v436
  %440 = vrot.lane.b32.xlu0 %v438, 32
  %v441 = vpop.permute.xlu0 %440
  %v443 = vadd.f32 %v433, %v441
  %v444 = vtanh.pop %v443
  %446 = vrot.lane.b32.xlu0 %v444, 32
  %v447 = vpop.permute.xlu0 %446
  %v449 = vmul.f32 %v431, %v447
  %s450 = scalar_lea.vmem [#allocation2], 16
  %v451 = vld [vmem:[%s450] sm:$0xff]
  %453 = vrot.lane.b32.xlu0 %v449, 64
  %v454 = vpop.permute.xlu0 %453
  %v455 = vsel %vm249, %v454, 0
  %457 = vmatprep.subr.mxu0 0.0
  %458 = vmatpush1.msra.mxu0 0.0
  %459 = vmatprep.subr.mxu0 0.0
  %460 = vmatpush1.msra.mxu0 0.0
  %461 = vmatprep.subr.mxu0 0.0
  %462 = vmatpush1.msra.mxu0 0.0
  %463 = vmatprep.subr.mxu0 0.0
  %464 = vmatpush1.msra.mxu0 0.0
  %465 = vmatprep.subr.mxu0 0.0
  %466 = vmatpush1.msra.mxu0 0.0
  %467 = vmatprep.subr.mxu0 0.0
  %468 = vmatpush1.msra.mxu0 0.0
  %469 = vmatprep.subr.mxu0 0.0
  %470 = vmatpush1.msra.mxu0 0.0
  %471 = vmatprep.subr.mxu0 0.0
  %472 = vmatpush1.msra.mxu0 0.0
  %473 = vmatprep.subr.mxu0 0.0
  %474 = vmatpush1.msra.mxu0 0.0
  %475 = vmatprep.subr.mxu0 0.0
  %476 = vmatpush1.msra.mxu0 0.0
  %477 = vmatprep.subr.mxu0 0.0
  %478 = vmatpush1.msra.mxu0 0.0
  %479 = vmatprep.subr.mxu0 0.0
  %480 = vmatpush1.msra.mxu0 0.0
  %481 = vmatprep.subr.mxu0 0.0
  %482 = vmatpush1.msra.mxu0 %v38
  %483 = vmatprep.subr.mxu0 0.0
  %484 = vmatpush1.msra.mxu0 %v37
  %485 = vmatprep.subr.mxu0 0.0
  %486 = vmatpush1.msra.mxu0 %v36
  %487 = vmatprep.subr.mxu0 0.0
  %488 = vmatpush1.msra.mxu0 %v35
  %489 = vmatprep.subr.mxu0 0.0
  %490 = vmatpush2.msra.mxu0 0.0
  %491 = vmatprep.subr.mxu0 0.0
  %492 = vmatpush2.msra.mxu0 0.0
  %493 = vmatprep.subr.mxu0 0.0
  %494 = vmatpush2.msra.mxu0 0.0
  %495 = vmatprep.subr.mxu0 0.0
  %496 = vmatpush2.msra.mxu0 0.0
  %497 = vmatprep.subr.mxu0 0.0
  %498 = vmatpush2.msra.mxu0 0.0
  %499 = vmatprep.subr.mxu0 0.0
  %500 = vmatpush2.msra.mxu0 0.0
  %501 = vmatprep.subr.mxu0 0.0
  %502 = vmatpush2.msra.mxu0 0.0
  %503 = vmatprep.subr.mxu0 0.0
  %504 = vmatpush2.msra.mxu0 0.0
  %505 = vmatprep.subr.mxu0 0.0
  %506 = vmatpush2.msra.mxu0 0.0
  %507 = vmatprep.subr.mxu0 0.0
  %508 = vmatpush2.msra.mxu0 0.0
  %509 = vmatprep.subr.mxu0 0.0
  %510 = vmatpush2.msra.mxu0 0.0
  %511 = vmatprep.subr.mxu0 0.0
  %512 = vmatpush2.msra.mxu0 0.0
  %513 = vmatprep.subr.mxu0 0.0
  %514 = vmatpush2.msra.mxu0 0.0
  %515 = vmatprep.subr.mxu0 0.0
  %516 = vmatpush2.msra.mxu0 0.0
  %517 = vmatprep.subr.mxu0 0.0
  %518 = vmatpush2.msra.mxu0 0.0
  %519 = vmatprep.subr.mxu0 0.0
  %520 = vmatpush2.msra.mxu0 0.0
  %521 = vmatprep.mubr.f32.mxu0 0.0
  %522 = vmatmul.mubr.f32.gmra.mxu0 %v455
  %v523 = vpop.f32.mrf.mxu0
  %v524 = vadd.f32 0.0, %v523
  %v525 = vpop.f32.mrf.mxu0
  %526 = vdwg.mxu0
  %v527 = vadd.f32 %v451, %v524
  %v528 = vxor.u32 %v527, 2147483648
  %v529 = vmul.f32 %v528, 1.442695
  %v530 = vpow.pop %v529
  %v531 = vadd.f32 %v530, 1.0
  %v532 = vrcp.pop %v531
  %v533 = vmul.f32 1.0, %v532
  %v534 = vtanh.pop %v527
  %v535 = vmul.f32 %v533, %v443
  %537 = vrot.lane.b32.xlu0 %v534, 32
  %v538 = vpop.permute.xlu0 %537
  %v540 = vmul.f32 %v533, %v538
  %542 = vrot.lane.b32.xlu0 %v540, 32
  %v543 = vpop.permute.xlu0 %542
  %v545 = vadd.f32 %v535, %v543
  %v546 = vtanh.pop %v545
  %548 = vrot.lane.b32.xlu0 %v546, 32
  %v549 = vpop.permute.xlu0 %548
  %v551 = vmul.f32 %v533, %v549
  %s552 = scalar_lea.vmem [#allocation2], 24
  %v553 = vld [vmem:[%s552] sm:$0xff]
  %555 = vrot.lane.b32.xlu0 %v551, 64
  %v556 = vpop.permute.xlu0 %555
  %v557 = vsel %vm249, %v556, 0
  %559 = vmatprep.subr.mxu0 0.0
  %560 = vmatpush1.msra.mxu0 0.0
  %561 = vmatprep.subr.mxu0 0.0
  %562 = vmatpush1.msra.mxu0 0.0
  %563 = vmatprep.subr.mxu0 0.0
  %564 = vmatpush1.msra.mxu0 0.0
  %565 = vmatprep.subr.mxu0 0.0
  %566 = vmatpush1.msra.mxu0 0.0
  %567 = vmatprep.subr.mxu0 0.0
  %568 = vmatpush1.msra.mxu0 0.0
  %569 = vmatprep.subr.mxu0 0.0
  %570 = vmatpush1.msra.mxu0 0.0
  %571 = vmatprep.subr.mxu0 0.0
  %572 = vmatpush1.msra.mxu0 0.0
  %573 = vmatprep.subr.mxu0 0.0
  %574 = vmatpush1.msra.mxu0 0.0
  %575 = vmatprep.subr.mxu0 0.0
  %576 = vmatpush1.msra.mxu0 0.0
  %577 = vmatprep.subr.mxu0 0.0
  %578 = vmatpush1.msra.mxu0 0.0
  %579 = vmatprep.subr.mxu0 0.0
  %580 = vmatpush1.msra.mxu0 0.0
  %581 = vmatprep.subr.mxu0 0.0
  %582 = vmatpush1.msra.mxu0 0.0
  %583 = vmatprep.subr.mxu0 0.0
  %584 = vmatpush1.msra.mxu0 %v38
  %585 = vmatprep.subr.mxu0 0.0
  %586 = vmatpush1.msra.mxu0 %v37
  %587 = vmatprep.subr.mxu0 0.0
  %588 = vmatpush1.msra.mxu0 %v36
  %589 = vmatprep.subr.mxu0 0.0
  %590 = vmatpush1.msra.mxu0 %v35
  %591 = vmatprep.subr.mxu0 0.0
  %592 = vmatpush2.msra.mxu0 0.0
  %593 = vmatprep.subr.mxu0 0.0
  %594 = vmatpush2.msra.mxu0 0.0
  %595 = vmatprep.subr.mxu0 0.0
  %596 = vmatpush2.msra.mxu0 0.0
  %597 = vmatprep.subr.mxu0 0.0
  %598 = vmatpush2.msra.mxu0 0.0
  %599 = vmatprep.subr.mxu0 0.0
  %600 = vmatpush2.msra.mxu0 0.0
  %601 = vmatprep.subr.mxu0 0.0
  %602 = vmatpush2.msra.mxu0 0.0
  %603 = vmatprep.subr.mxu0 0.0
  %604 = vmatpush2.msra.mxu0 0.0
  %605 = vmatprep.subr.mxu0 0.0
  %606 = vmatpush2.msra.mxu0 0.0
  %607 = vmatprep.subr.mxu0 0.0
  %608 = vmatpush2.msra.mxu0 0.0
  %609 = vmatprep.subr.mxu0 0.0
  %610 = vmatpush2.msra.mxu0 0.0
  %611 = vmatprep.subr.mxu0 0.0
  %612 = vmatpush2.msra.mxu0 0.0
  %613 = vmatprep.subr.mxu0 0.0
  %614 = vmatpush2.msra.mxu0 0.0
  %615 = vmatprep.subr.mxu0 0.0
  %616 = vmatpush2.msra.mxu0 0.0
  %617 = vmatprep.subr.mxu0 0.0
  %618 = vmatpush2.msra.mxu0 0.0
  %619 = vmatprep.subr.mxu0 0.0
  %620 = vmatpush2.msra.mxu0 0.0
  %621 = vmatprep.subr.mxu0 0.0
  %622 = vmatpush2.msra.mxu0 0.0
  %623 = vmatprep.mubr.f32.mxu0 0.0
  %624 = vmatmul.mubr.f32.gmra.mxu0 %v557
  %v625 = vpop.f32.mrf.mxu0
  %v626 = vadd.f32 0.0, %v625
  %v627 = vpop.f32.mrf.mxu0
  %628 = vdwg.mxu0
  %v629 = vadd.f32 %v553, %v626
  %v630 = vxor.u32 %v629, 2147483648
  %v631 = vmul.f32 %v630, 1.442695
  %v632 = vpow.pop %v631
  %v633 = vadd.f32 %v632, 1.0
  %v634 = vrcp.pop %v633
  %v635 = vmul.f32 1.0, %v634
  %v636 = vtanh.pop %v629
  %v637 = vmul.f32 %v635, %v545
  %639 = vrot.lane.b32.xlu0 %v636, 32
  %v640 = vpop.permute.xlu0 %639
  %v642 = vmul.f32 %v635, %v640
  %644 = vrot.lane.b32.xlu0 %v642, 32
  %v645 = vpop.permute.xlu0 %644
  %v647 = vadd.f32 %v637, %v645
  %v648 = vtanh.pop %v647
  %650 = vrot.lane.b32.xlu0 %v648, 32
  %v651 = vpop.permute.xlu0 %650
  %v653 = vmul.f32 %v635, %v651
  %s654 = scalar_lea.vmem [#allocation2], 32
  %v655 = vld [vmem:[%s654] sm:$0xff]
  %657 = vrot.lane.b32.xlu0 %v653, 64
  %v658 = vpop.permute.xlu0 %657
  %v659 = vsel %vm249, %v658, 0
  %661 = vmatprep.subr.mxu0 0.0
  %662 = vmatpush1.msra.mxu0 0.0
  %663 = vmatprep.subr.mxu0 0.0
  %664 = vmatpush1.msra.mxu0 0.0
  %665 = vmatprep.subr.mxu0 0.0
  %666 = vmatpush1.msra.mxu0 0.0
  %667 = vmatprep.subr.mxu0 0.0
  %668 = vmatpush1.msra.mxu0 0.0
  %669 = vmatprep.subr.mxu0 0.0
  %670 = vmatpush1.msra.mxu0 0.0
  %671 = vmatprep.subr.mxu0 0.0
  %672 = vmatpush1.msra.mxu0 0.0
  %673 = vmatprep.subr.mxu0 0.0
  %674 = vmatpush1.msra.mxu0 0.0
  %675 = vmatprep.subr.mxu0 0.0
  %676 = vmatpush1.msra.mxu0 0.0
  %677 = vmatprep.subr.mxu0 0.0
  %678 = vmatpush1.msra.mxu0 0.0
  %679 = vmatprep.subr.mxu0 0.0
  %680 = vmatpush1.msra.mxu0 0.0
  %681 = vmatprep.subr.mxu0 0.0
  %682 = vmatpush1.msra.mxu0 0.0
  %683 = vmatprep.subr.mxu0 0.0
  %684 = vmatpush1.msra.mxu0 0.0
  %685 = vmatprep.subr.mxu0 0.0
  %686 = vmatpush1.msra.mxu0 %v38
  %687 = vmatprep.subr.mxu0 0.0
  %688 = vmatpush1.msra.mxu0 %v37
  %689 = vmatprep.subr.mxu0 0.0
  %690 = vmatpush1.msra.mxu0 %v36
  %691 = vmatprep.subr.mxu0 0.0
  %692 = vmatpush1.msra.mxu0 %v35
  %693 = vmatprep.subr.mxu0 0.0
  %694 = vmatpush2.msra.mxu0 0.0
  %695 = vmatprep.subr.mxu0 0.0
  %696 = vmatpush2.msra.mxu0 0.0
  %697 = vmatprep.subr.mxu0 0.0
  %698 = vmatpush2.msra.mxu0 0.0
  %699 = vmatprep.subr.mxu0 0.0
  %700 = vmatpush2.msra.mxu0 0.0
  %701 = vmatprep.subr.mxu0 0.0
  %702 = vmatpush2.msra.mxu0 0.0
  %703 = vmatprep.subr.mxu0 0.0
  %704 = vmatpush2.msra.mxu0 0.0
  %705 = vmatprep.subr.mxu0 0.0
  %706 = vmatpush2.msra.mxu0 0.0
  %707 = vmatprep.subr.mxu0 0.0
  %708 = vmatpush2.msra.mxu0 0.0
  %709 = vmatprep.subr.mxu0 0.0
  %710 = vmatpush2.msra.mxu0 0.0
  %711 = vmatprep.subr.mxu0 0.0
  %712 = vmatpush2.msra.mxu0 0.0
  %713 = vmatprep.subr.mxu0 0.0
  %714 = vmatpush2.msra.mxu0 0.0
  %715 = vmatprep.subr.mxu0 0.0
  %716 = vmatpush2.msra.mxu0 0.0
  %717 = vmatprep.subr.mxu0 0.0
  %718 = vmatpush2.msra.mxu0 0.0
  %719 = vmatprep.subr.mxu0 0.0
  %720 = vmatpush2.msra.mxu0 0.0
  %721 = vmatprep.subr.mxu0 0.0
  %722 = vmatpush2.msra.mxu0 0.0
  %723 = vmatprep.subr.mxu0 0.0
  %724 = vmatpush2.msra.mxu0 0.0
  %725 = vmatprep.mubr.f32.mxu0 0.0
  %726 = vmatmul.mubr.f32.gmra.mxu0 %v659
  %v727 = vpop.f32.mrf.mxu0
  %v728 = vadd.f32 0.0, %v727
  %v729 = vpop.f32.mrf.mxu0
  %730 = vdwg.mxu0
  %v731 = vadd.f32 %v655, %v728
  %v732 = vxor.u32 %v731, 2147483648
  %v733 = vmul.f32 %v732, 1.442695
  %v734 = vpow.pop %v733
  %v735 = vadd.f32 %v734, 1.0
  %v736 = vrcp.pop %v735
  %v737 = vmul.f32 1.0, %v736
  %v738 = vtanh.pop %v731
  %v739 = vmul.f32 %v737, %v647
  %741 = vrot.lane.b32.xlu0 %v738, 32
  %v742 = vpop.permute.xlu0 %741
  %v744 = vmul.f32 %v737, %v742
  %746 = vrot.lane.b32.xlu0 %v744, 32
  %v747 = vpop.permute.xlu0 %746
  %v749 = vadd.f32 %v739, %v747
  %v750 = vtanh.pop %v749
  %752 = vrot.lane.b32.xlu0 %v750, 32
  %v753 = vpop.permute.xlu0 %752
  %v755 = vmul.f32 %v737, %v753
  %v756 = vxor.u32 %v245, 2147483648
  %v757 = vmul.f32 %v756, 1.442695
  %v758 = vpow.pop %v757
  %v759 = vadd.f32 %v758, 1.0
  %v760 = vrcp.pop %v759
  %v761 = vmul.f32 1.0, %v760
  %v762 = vtanh.pop %v245
  %v763 = vmul.f32 %v761, 0.0
  %765 = vrot.lane.b32.xlu0 %v762, 32
  %v766 = vpop.permute.xlu0 %765
  %v768 = vmul.f32 %v761, %v766
  %770 = vrot.lane.b32.xlu0 %v768, 32
  %v771 = vpop.permute.xlu0 %770
  %v773 = vadd.f32 %v763, %v771
  %v774 = vtanh.pop %v773
  %776 = vrot.lane.b32.xlu0 %v774, 32
  %v777 = vpop.permute.xlu0 %776
  %v779 = vmul.f32 %v761, %v777
  %v780 = vld [vmem:[%s7] sm:$0xff]
  %v781 = vld [vmem:[%s7 + $0x8] sm:$0xff]
  %v782 = vld [vmem:[%s7 + $0x10] sm:$0xff]
  %v783 = vld [vmem:[%s7 + $0x18] sm:$0xff]
  %v784 = vld [vmem:[%s8] sm:$0xff]
  %v785 = vld [vmem:[%s8 + $0x8] sm:$0xff]
  %v786 = vld [vmem:[%s8 + $0x10] sm:$0xff]
  %v787 = vld [vmem:[%s8 + $0x18] sm:$0xff]
  %789 = vrot.lane.b32.xlu0 %v779, 64
  %v790 = vpop.permute.xlu0 %789
  %v791 = vsel %vm249, %v790, 0
  %793 = vmatprep.subr.mxu0 0.0
  %794 = vmatpush1.msra.mxu0 0.0
  %795 = vmatprep.subr.mxu0 0.0
  %796 = vmatpush1.msra.mxu0 0.0
  %797 = vmatprep.subr.mxu0 0.0
  %798 = vmatpush1.msra.mxu0 0.0
  %799 = vmatprep.subr.mxu0 0.0
  %800 = vmatpush1.msra.mxu0 0.0
  %801 = vmatprep.subr.mxu0 0.0
  %802 = vmatpush1.msra.mxu0 0.0
  %803 = vmatprep.subr.mxu0 0.0
  %804 = vmatpush1.msra.mxu0 0.0
  %805 = vmatprep.subr.mxu0 0.0
  %806 = vmatpush1.msra.mxu0 0.0
  %807 = vmatprep.subr.mxu0 0.0
  %808 = vmatpush1.msra.mxu0 0.0
  %809 = vmatprep.subr.mxu0 0.0
  %810 = vmatpush1.msra.mxu0 0.0
  %811 = vmatprep.subr.mxu0 0.0
  %812 = vmatpush1.msra.mxu0 0.0
  %813 = vmatprep.subr.mxu0 0.0
  %814 = vmatpush1.msra.mxu0 0.0
  %815 = vmatprep.subr.mxu0 0.0
  %816 = vmatpush1.msra.mxu0 0.0
  %817 = vmatprep.subr.mxu0 0.0
  %818 = vmatpush1.msra.mxu0 %v787
  %819 = vmatprep.subr.mxu0 0.0
  %820 = vmatpush1.msra.mxu0 %v786
  %821 = vmatprep.subr.mxu0 0.0
  %822 = vmatpush1.msra.mxu0 %v785
  %823 = vmatprep.subr.mxu0 0.0
  %824 = vmatpush1.msra.mxu0 %v784
  %825 = vmatprep.subr.mxu0 0.0
  %826 = vmatpush2.msra.mxu0 0.0
  %827 = vmatprep.subr.mxu0 0.0
  %828 = vmatpush2.msra.mxu0 0.0
  %829 = vmatprep.subr.mxu0 0.0
  %830 = vmatpush2.msra.mxu0 0.0
  %831 = vmatprep.subr.mxu0 0.0
  %832 = vmatpush2.msra.mxu0 0.0
  %833 = vmatprep.subr.mxu0 0.0
  %834 = vmatpush2.msra.mxu0 0.0
  %835 = vmatprep.subr.mxu0 0.0
  %836 = vmatpush2.msra.mxu0 0.0
  %837 = vmatprep.subr.mxu0 0.0
  %838 = vmatpush2.msra.mxu0 0.0
  %839 = vmatprep.subr.mxu0 0.0
  %840 = vmatpush2.msra.mxu0 0.0
  %841 = vmatprep.subr.mxu0 0.0
  %842 = vmatpush2.msra.mxu0 0.0
  %843 = vmatprep.subr.mxu0 0.0
  %844 = vmatpush2.msra.mxu0 0.0
  %845 = vmatprep.subr.mxu0 0.0
  %846 = vmatpush2.msra.mxu0 0.0
  %847 = vmatprep.subr.mxu0 0.0
  %848 = vmatpush2.msra.mxu0 0.0
  %849 = vmatprep.subr.mxu0 0.0
  %850 = vmatpush2.msra.mxu0 0.0
  %851 = vmatprep.subr.mxu0 0.0
  %852 = vmatpush2.msra.mxu0 0.0
  %853 = vmatprep.subr.mxu0 0.0
  %854 = vmatpush2.msra.mxu0 0.0
  %855 = vmatprep.subr.mxu0 0.0
  %856 = vmatpush2.msra.mxu0 0.0
  %857 = vmatprep.mubr.f32.mxu0 0.0
  %858 = vmatmul.mubr.f32.gmra.mxu0 %v791
  %v859 = vpop.f32.mrf.mxu0
  %v860 = vadd.f32 0.0, %v859
  %v861 = vpop.f32.mrf.mxu0
  %862 = vdwg.mxu0
  %864 = vrot.lane.b32.xlu0 %v755, 64
  %v865 = vpop.permute.xlu0 %864
  %v866 = vsel %vm249, %v865, 0
  %868 = vmatprep.subr.mxu0 0.0
  %869 = vmatpush1.msra.mxu0 0.0
  %870 = vmatprep.subr.mxu0 0.0
  %871 = vmatpush1.msra.mxu0 0.0
  %872 = vmatprep.subr.mxu0 0.0
  %873 = vmatpush1.msra.mxu0 0.0
  %874 = vmatprep.subr.mxu0 0.0
  %875 = vmatpush1.msra.mxu0 0.0
  %876 = vmatprep.subr.mxu0 0.0
  %877 = vmatpush1.msra.mxu0 0.0
  %878 = vmatprep.subr.mxu0 0.0
  %879 = vmatpush1.msra.mxu0 0.0
  %880 = vmatprep.subr.mxu0 0.0
  %881 = vmatpush1.msra.mxu0 0.0
  %882 = vmatprep.subr.mxu0 0.0
  %883 = vmatpush1.msra.mxu0 0.0
  %884 = vmatprep.subr.mxu0 0.0
  %885 = vmatpush1.msra.mxu0 0.0
  %886 = vmatprep.subr.mxu0 0.0
  %887 = vmatpush1.msra.mxu0 0.0
  %888 = vmatprep.subr.mxu0 0.0
  %889 = vmatpush1.msra.mxu0 0.0
  %890 = vmatprep.subr.mxu0 0.0
  %891 = vmatpush1.msra.mxu0 0.0
  %892 = vmatprep.subr.mxu0 0.0
  %893 = vmatpush1.msra.mxu0 %v783
  %894 = vmatprep.subr.mxu0 0.0
  %895 = vmatpush1.msra.mxu0 %v782
  %896 = vmatprep.subr.mxu0 0.0
  %897 = vmatpush1.msra.mxu0 %v781
  %898 = vmatprep.subr.mxu0 0.0
  %899 = vmatpush1.msra.mxu0 %v780
  %900 = vmatprep.subr.mxu0 0.0
  %901 = vmatpush2.msra.mxu0 0.0
  %902 = vmatprep.subr.mxu0 0.0
  %903 = vmatpush2.msra.mxu0 0.0
  %904 = vmatprep.subr.mxu0 0.0
  %905 = vmatpush2.msra.mxu0 0.0
  %906 = vmatprep.subr.mxu0 0.0
  %907 = vmatpush2.msra.mxu0 0.0
  %908 = vmatprep.subr.mxu0 0.0
  %909 = vmatpush2.msra.mxu0 0.0
  %910 = vmatprep.subr.mxu0 0.0
  %911 = vmatpush2.msra.mxu0 0.0
  %912 = vmatprep.subr.mxu0 0.0
  %913 = vmatpush2.msra.mxu0 0.0
  %914 = vmatprep.subr.mxu0 0.0
  %915 = vmatpush2.msra.mxu0 0.0
  %916 = vmatprep.subr.mxu0 0.0
  %917 = vmatpush2.msra.mxu0 0.0
  %918 = vmatprep.subr.mxu0 0.0
  %919 = vmatpush2.msra.mxu0 0.0
  %920 = vmatprep.subr.mxu0 0.0
  %921 = vmatpush2.msra.mxu0 0.0
  %922 = vmatprep.subr.mxu0 0.0
  %923 = vmatpush2.msra.mxu0 0.0
  %924 = vmatprep.subr.mxu0 0.0
  %925 = vmatpush2.msra.mxu0 0.0
  %926 = vmatprep.subr.mxu0 0.0
  %927 = vmatpush2.msra.mxu0 0.0
  %928 = vmatprep.subr.mxu0 0.0
  %929 = vmatpush2.msra.mxu0 0.0
  %930 = vmatprep.subr.mxu0 0.0
  %931 = vmatpush2.msra.mxu0 0.0
  %932 = vmatprep.mubr.f32.mxu0 0.0
  %933 = vmatmul.mubr.f32.gmra.mxu0 %v866
  %v934 = vpop.f32.mrf.mxu0
  %v935 = vadd.f32 %v860, %v934
  %v936 = vpop.f32.mrf.mxu0
  %937 = vdwg.mxu0
  %v938 = vld [vmem:[%s9] sm:$0x1]
  %v940 = vlaneseq
  %v941 = vshrl.u32 %v940, 7
  %v942 = vsub.s32 0, %v941
  %v943 = vrot.slane %v938, %v942
  %v945 = vadd.f32 %v935, %v943
  %946 = vmax.xlane.f32.xlu0 %v945
  %v947 = vpop.xlane.xlu0 %946
  %v948 = vsub.f32 %v945, %v947
  %v949 = vmul.f32 %v948, 1.442695
  %v950 = vpow.pop %v949
  %951 = vadd.xlane.f32.xlu0 %v950
  %v952 = vpop.xlane.xlu0 %951
  %v953 = vlog2.pop %v952
  %v954 = vmul.f32 %v953, 0.6931472
  %v955 = vadd.f32 %v947, %v954
  %v956 = vsub.f32 %v945, %v955
  %957 = vst [vmem:[%s10] sm:$0xff] %v956
  // Predicated region
  $region42: #{lstm_model_forward.1} parent=0 // pred_check
    _
  $region43: #{lstm_model_forward.1} parent=0 // pred_check_branch
    %959 = sbr.rel (0) target = $region45
  $region44: #{lstm_model_forward.1} parent=0 // pred_region
    _
  $region45: #{lstm_model_forward.1} parent=0 // pred_fallthru
    _
  // Predicated region
  $region46: #{lstm_model_forward.1} parent=0 // pred_check
    _
  $region47: #{lstm_model_forward.1} parent=0 // pred_check_branch
    %961 = sbr.rel (0) target = $region49
  $region48: #{lstm_model_forward.1} parent=0 // pred_region
    _
  $region49: #{lstm_model_forward.1} parent=0 // pred_fallthru
    _

</llo_original>
